<compile_context>
chip_gen: v5e
topology: v5e:2x2
jax: 0.10.0
libtpu: 0.0.40
codegen_flags: <defaults>
</compile_context>

<pallas_src>
import functools
import math

import jax
import jax.numpy as jnp
from jax.experimental import pallas as pl
from jax.experimental.pallas import tpu as pltpu

BN_EPS = 1e-5
LANE = 128      # vreg lane width  -> feature padding granule
SUBLANE = 8     # f32 sublane rows -> batch padding granule
MAX_TK = 512    # target K-slab size (multiple of LANE)


def _round_up(v, m):
    return ((v + m - 1) // m) * m


# ----------------------------------------------------------------------------
# Kernel. grid = (layer, k_slab); the activation is resident in the output
# block (constant index map) laid out K-slab-major: (n_slabs, B_pad, TK).
# ----------------------------------------------------------------------------
def _fused_mlp_kernel(s_ref, x_ref, w_ref, gb_ref, o_ref, acc_ref, mask_ref,
                      *, tk, nmax, num_layers):
    l = pl.program_id(0)            # layer index
    k = pl.program_id(1)            # contraction (K) slab index
    kb = s_ref[l]                   # number of REAL K slabs for this layer
    n = s_ref[num_layers]           # true (unpadded) batch size

    # First grid step: seed the resident activation and build the padded-row
    # mask once (hoisted out of the per-layer work).
    @pl.when((l == 0) & (k == 0))
    def _():
        o_ref[...] = x_ref[...]
        rows = jax.lax.broadcasted_iota(jnp.int32, mask_ref.shape, 0)
        mask_ref[...] = (rows < n).astype(jnp.float32)

    @pl.when(k == 0)
    def _():
        acc_ref[...] = jnp.zeros_like(acc_ref)

    # One K slab on the MXU: bf16 inputs, f32 accumulation. Padding-only slabs
    # (k >= kb) are skipped entirely; their weight BlockSpec index repeats the
    # previous step's so no weight DMA is issued for them either.
    # Linear bias omitted: train-mode BN mean subtraction cancels it exactly.
    @pl.when(k < kb)
    def _():
        a = o_ref[k].astype(jnp.bfloat16)                 # (B_pad, tk)
        acc_ref[...] += jnp.dot(a, w_ref[0],
                                preferred_element_type=jnp.float32)

    # Last real K slab of the layer: BN (two-pass, masked) + ReLU, then write
    # the new activation back into the resident slab buffer.
    @pl.when(k == kb - 1)
    def _():
        z = acc_ref[...]                                  # (B_pad, nmax), padded rows == 0
        mask = mask_ref[...]                              # (B_pad, 1) 1./0. row mask
        inv_n = 1.0 / n.astype(jnp.float32)
        mean = jnp.sum(z, axis=0, keepdims=True) * inv_n
        diff = (z - mean) * mask                          # two-pass variance (exact, masked)
        var = jnp.sum(diff * diff, axis=0, keepdims=True) * inv_n
        gb = gb_ref[0]                                    # (2, nmax): gamma row 0, beta row 1
        scale = gb[0:1] * jax.lax.rsqrt(var + BN_EPS)     # rsqrt -> EUP slot
        shift = gb[1:2] - mean * scale
        y = jnp.maximum(z * scale + shift, 0.0) * mask    # ReLU + row mask (one FMA-ish pass)
        n_out_slabs = -(-nmax // tk)                      # static unroll
        for j in range(n_out_slabs):
            w_cols = min(tk, nmax - j * tk)
            o_ref[j, :, :w_cols] = y[:, j * tk:j * tk + w_cols].astype(o_ref.dtype)


# ----------------------------------------------------------------------------
# Wrapper
# ----------------------------------------------------------------------------
@functools.partial(jax.jit, static_argnums=(4,))
def mlp_pallas(x, w_stack, gb_stack, kblocks, out_dim):
    """x: (B, Din) f32. w_stack: (L, Kmax, Nmax) bf16 (pre-transposed, padded).
    gb_stack: (L, 2, Nmax) f32. kblocks: (L,) int32. Returns (B, out_dim) f32."""
    B, Din = x.shape
    L, kmax, nmax = w_stack.shape
    tk = math.gcd(kmax, MAX_TK)                   # multiple of 128, divides kmax
    kb_grid = kmax // tk                          # K-slab grid extent
    a_width = _round_up(max(kmax, nmax), tk)      # resident activation width
    n_slabs = a_width // tk
    b_pad = _round_up(max(B, SUBLANE), SUBLANE)

    # Zero-pad the input and pre-permute it into the K-slab-major layout the
    # kernel keeps resident in VMEM (JAX glue, runs once).
    x_pad = jnp.zeros((b_pad, a_width), jnp.float32).at[:B, :Din].set(x)
    x_slabs = jnp.transpose(x_pad.reshape(b_pad, n_slabs, tk), (1, 0, 2))

    # Scalar-prefetch: per-layer real K-slab counts + true batch size.
    scalars = jnp.concatenate([kblocks.astype(jnp.int32),
                               jnp.array([B], jnp.int32)])

    kernel = functools.partial(_fused_mlp_kernel, tk=tk, nmax=nmax, num_layers=L)

    # Explicit VMEM budget from the actual block sizes (default scoped limit is
    # 32 MiB on v6e / 16 MiB on v5e; v7x has only 64 MiB physical).
    wblk = tk * nmax * 2                          # bf16 weight slab
    actb = b_pad * a_width * 4                    # f32 activation block
    need = (2 * wblk                              # double-buffered weight slab
            + 2 * actb + 2 * actb                 # input + output activation blocks
            + 4 * (2 * nmax * 4)                  # gamma/beta blocks
            + b_pad * nmax * 4                    # f32 accumulator scratch
            + b_pad * LANE * 4)                   # row-mask scratch
    vmem_limit = int(min(max(2 * need, 32 << 20), 96 << 20))

    cost = pl.CostEstimate(
        flops=2 * b_pad * kmax * nmax * L,
        transcendentals=L * nmax,
        bytes_accessed=int(w_stack.size) * 2 + int(gb_stack.size) * 4 + 2 * actb)

    grid_spec = pltpu.PrefetchScalarGridSpec(
        num_scalar_prefetch=1,
        grid=(L, kb_grid),                        # reduction (K) axis last
        in_specs=[
            # Initial activation: fetched once, resident.
            pl.BlockSpec((n_slabs, b_pad, tk), lambda l, k, s: (0, 0, 0)),
            # Per-layer, per-K-slab weight tile; dead slabs repeat the previous
            # index so no DMA is issued for pure padding.
            pl.BlockSpec((1, tk, nmax),
                         lambda l, k, s: (l, jnp.minimum(k, s[l] - 1), 0)),
            # gamma+beta merged into one small per-layer block (single DMA).
            pl.BlockSpec((1, 2, nmax), lambda l, k, s: (l, 0, 0)),
        ],
        # Constant index -> activation stays resident in VMEM across all grid
        # steps and is written back to HBM once at the end.
        out_specs=pl.BlockSpec((n_slabs, b_pad, tk), lambda l, k, s: (0, 0, 0)),
        scratch_shapes=[
            pltpu.VMEM((b_pad, nmax), jnp.float32),   # f32 matmul accumulator
            pltpu.VMEM((b_pad, 1), jnp.float32),      # padded-row mask
        ],
    )

    out_slabs = pl.pallas_call(
        kernel,
        out_shape=jax.ShapeDtypeStruct((n_slabs, b_pad, tk), jnp.float32),
        grid_spec=grid_spec,
        compiler_params=pltpu.CompilerParams(
            dimension_semantics=("arbitrary", "arbitrary"),
            vmem_limit_bytes=vmem_limit),
        cost_estimate=cost,
    )(scalars, x_slabs, w_stack, gb_stack)

    out = jnp.transpose(out_slabs, (1, 0, 2)).reshape(b_pad, a_width)
    return out[:B, :out_dim]


# ----------------------------------------------------------------------------
# Parameter init (nn.Linear / nn.BatchNorm1d defaults) and kernel packing
# ----------------------------------------------------------------------------
def init_mlp_params(key, input_size, hidden_layers):
    params = []
    prev = input_size
    for h in hidden_layers:
        key, kw, kb = jax.random.split(key, 3)
        bound = 1.0 / math.sqrt(prev)
        w = jax.random.uniform(kw, (h, prev), jnp.float32, -bound, bound)
        b = jax.random.uniform(kb, (h,), jnp.float32, -bound, bound)
        gamma = jnp.ones((h,), jnp.float32)
        beta = jnp.zeros((h,), jnp.float32)
        params.append((w, b, gamma, beta))
        prev = h
    return params


def pack_params(params, input_size):
    """Pre-transpose once, cast weights to bf16, pad each layer into its own
    128-aligned footprint inside a rectangular (L, Kmax, Nmax) stack, and
    record per-layer real K-slab counts so padding-only slabs are never
    DMAed or matmul'ed."""
    L = len(params)
    out_dims = [w.shape[0] for (w, *_r) in params]
    in_dims = [input_size] + out_dims[:-1]
    kmax = max(_round_up(d, LANE) for d in in_dims)
    nmax = max(_round_up(d, LANE) for d in out_dims)
    tk = math.gcd(kmax, MAX_TK)      # must match the wrapper's formula

    w_stack = jnp.zeros((L, kmax, nmax), jnp.bfloat16)
    gb_stack = jnp.zeros((L, 2, nmax), jnp.float32)
    kblocks = []
    prev = input_size
    for i, (w, _b, gamma, beta) in enumerate(params):
        h = w.shape[0]
        w_stack = w_stack.at[i, :prev, :h].set(
            jnp.transpose(w).astype(jnp.bfloat16))
        # Linear bias intentionally NOT packed: exactly cancelled by the
        # train-mode BN mean subtraction that immediately follows the matmul.
        gb_stack = gb_stack.at[i, 0, :h].set(gamma)
        gb_stack = gb_stack.at[i, 1, :h].set(beta)
        kblocks.append(-(-_round_up(prev, LANE) // tk))
        prev = h
    return w_stack, gb_stack, jnp.array(kblocks, jnp.int32), out_dims[-1]


def mlp_reference(x, params, weight_dtype=jnp.float32):
    """Pure-JAX reference of the PyTorch module (bias included).
    weight_dtype=bfloat16 emulates the kernel's bf16-input / f32-accumulate
    matmul; float32 is the exact PyTorch math."""
    for (w, b, gamma, beta) in params:
        a = x.astype(weight_dtype)
        wt = w.astype(weight_dtype).T
        z = jnp.dot(a, wt, preferred_element_type=jnp.float32) + b
        mean = jnp.mean(z, axis=0, keepdims=True)
        var = jnp.mean((z - mean) ** 2, axis=0, keepdims=True)
        z = (z - mean) * jax.lax.rsqrt(var + BN_EPS)
        x = jnp.maximum(z * gamma + beta, 0.0)
    return x


if __name__ == "__main__":
    key = jax.random.PRNGKey(0)
    k_x, k_p = jax.random.split(key)

    batch = 8
    input_size = 32
    hidden_layers = (32, 16)

    x = jax.random.normal(k_x, (batch, input_size), jnp.float32)
    params = init_mlp_params(k_p, input_size, hidden_layers)
    w_stack, gb_stack, kblocks, out_dim = pack_params(params, input_size)

    out = mlp_pallas(x, w_stack, gb_stack, kblocks, out_dim)
    jax.block_until_ready(out)

    assert out.shape == (batch, hidden_layers[-1])
    assert bool(jnp.all(out >= 0.0))                    # ReLU output is non-negative

    # Tight check vs. a reference that emulates the kernel's bf16-input /
    # f32-accumulate matmul (and includes the bias the kernel folds into BN).
    ref_bf16 = mlp_reference(x, params, weight_dtype=jnp.bfloat16)
    assert bool(jnp.allclose(out, ref_bf16, rtol=5e-3, atol=5e-3))

    # Loose sanity check vs. the full-f32 PyTorch-equivalent math (bf16 weights
    # introduce a small, expected deviation).
    ref_f32 = mlp_reference(x, params, weight_dtype=jnp.float32)
    assert bool(jnp.allclose(out, ref_f32, rtol=1e-1, atol=1e-1))

    print("KERNEL_OK")
</pallas_src>

<mosaic_0001>
module attributes {stable_mosaic.version = 11 : i64} {
  func.func @_fused_mlp_kernel(%arg0: i32, %arg1: i32, %arg2: memref<3xi32, #tpu.memory_space<smem>>, %arg3: memref<1x8x128xf32, #tpu.memory_space<vmem>>, %arg4: memref<1x128x128xbf16, #tpu.memory_space<vmem>>, %arg5: memref<1x2x128xf32, #tpu.memory_space<vmem>>, %arg6: memref<1x8x128xf32, #tpu.memory_space<vmem>>, %arg7: memref<8x128xf32, #tpu.memory_space<vmem>>, %arg8: memref<8x1xf32, #tpu.memory_space<vmem>>) attributes {dimension_semantics = [#tpu.dimension_semantics<arbitrary>, #tpu.dimension_semantics<arbitrary>], iteration_bounds = array<i64: 2, 1>, scalar_prefetch = 1 : i64, scratch_operands = 2 : i64, tpu.core_type = #tpu.core_type<tc>, window_params = [{pipeline_mode = #tpu.pipeline_mode<synchronous>, transform_indices = @transform_0, window_bounds = array<i64: 1, 8, 128>}, {transform_indices = @transform_1, window_bounds = array<i64: 1, 128, 128>}, {transform_indices = @transform_2, window_bounds = array<i64: 1, 2, 128>}, {pipeline_mode = #tpu.pipeline_mode<synchronous>, transform_indices = @transform_3, window_bounds = array<i64: 1, 8, 128>}]} {
    %0 = arith.index_cast %arg0 : i32 to index
    %1 = memref.load %arg2[%0] : memref<3xi32, #tpu.memory_space<smem>>
    %c2 = arith.constant 2 : index
    %2 = memref.load %arg2[%c2] : memref<3xi32, #tpu.memory_space<smem>>
    %c0_i32 = arith.constant 0 : i32
    %3 = arith.cmpi eq, %arg0, %c0_i32 : i32
    %c0_i32_0 = arith.constant 0 : i32
    %4 = arith.cmpi eq, %arg1, %c0_i32_0 : i32
    %5 = arith.andi %3, %4 : i1
    %6 = arith.extui %5 : i1 to i32
    %c0_i32_1 = arith.constant 0 : i32
    %7 = arith.cmpi ne, %6, %c0_i32_1 : i32
    scf.if %7 {
      %c0 = arith.constant 0 : index
      %c0_6 = arith.constant 0 : index
      %c0_7 = arith.constant 0 : index
      %18 = vector.load %arg3[%c0, %c0_6, %c0_7] : memref<1x8x128xf32, #tpu.memory_space<vmem>>, vector<1x8x128xf32>
      %c0_8 = arith.constant 0 : index
      %c0_9 = arith.constant 0 : index
      %c0_10 = arith.constant 0 : index
      %19 = vector.load %arg6[%c0_8, %c0_9, %c0_10] : memref<1x8x128xf32, #tpu.memory_space<vmem>>, vector<1x8x128xf32>
      tpu.vector_store %arg6[%c0_8, %c0_9, %c0_10], %18 {strides = array<i32>} : memref<1x8x128xf32, #tpu.memory_space<vmem>>, vector<1x8x128xf32>,
      %20 = tpu.iota {dimensions = array<i32: 0>} : vector<8x1xi32>
      %21 = vector.broadcast %2 : i32 to vector<8x1xi32>
      %22 = arith.cmpi slt, %20, %21 : vector<8x1xi32>
      %23 = arith.extui %22 : vector<8x1xi1> to vector<8x1xi32>
      %24 = arith.sitofp %23 : vector<8x1xi32> to vector<8x1xf32>
      %c0_11 = arith.constant 0 : index
      %c0_12 = arith.constant 0 : index
      %25 = vector.load %arg8[%c0_11, %c0_12] : memref<8x1xf32, #tpu.memory_space<vmem>>, vector<8x1xf32>
      tpu.vector_store %arg8[%c0_11, %c0_12], %24 {strides = array<i32>} : memref<8x1xf32, #tpu.memory_space<vmem>>, vector<8x1xf32>,
    } else {
    }
    %c0_i32_2 = arith.constant 0 : i32
    %8 = arith.cmpi eq, %arg1, %c0_i32_2 : i32
    %9 = arith.extui %8 : i1 to i32
    %c0_i32_3 = arith.constant 0 : i32
    %10 = arith.cmpi ne, %9, %c0_i32_3 : i32
    scf.if %10 {
      %cst = arith.constant 0.000000e+00 : f32
      %18 = vector.broadcast %cst : f32 to vector<8x128xf32>
      %c0 = arith.constant 0 : index
      %c0_6 = arith.constant 0 : index
      %19 = vector.load %arg7[%c0, %c0_6] : memref<8x128xf32, #tpu.memory_space<vmem>>, vector<8x128xf32>
      tpu.vector_store %arg7[%c0, %c0_6], %18 {strides = array<i32>} : memref<8x128xf32, #tpu.memory_space<vmem>>, vector<8x128xf32>,
    } else {
    }
    %11 = arith.cmpi slt, %arg1, %1 : i32
    %12 = arith.extui %11 : i1 to i32
    %c0_i32_4 = arith.constant 0 : i32
    %13 = arith.cmpi ne, %12, %c0_i32_4 : i32
    scf.if %13 {
      %18 = arith.index_cast %arg1 : i32 to index
      %c0 = arith.constant 0 : index
      %c0_6 = arith.constant 0 : index
      %19 = vector.load %arg6[%18, %c0, %c0_6] : memref<1x8x128xf32, #tpu.memory_space<vmem>>, vector<1x8x128xf32>
      %20 = vector.shape_cast %19 : vector<1x8x128xf32> to vector<8x128xf32>
      %21 = arith.truncf %20 : vector<8x128xf32> to vector<8x128xbf16>
      %c0_7 = arith.constant 0 : index
      %c0_8 = arith.constant 0 : index
      %22 = vector.load %arg7[%c0_7, %c0_8] : memref<8x128xf32, #tpu.memory_space<vmem>>, vector<8x128xf32>
      %c0_9 = arith.constant 0 : index
      %c0_10 = arith.constant 0 : index
      %c0_11 = arith.constant 0 : index
      %23 = vector.load %arg4[%c0_9, %c0_10, %c0_11] : memref<1x128x128xbf16, #tpu.memory_space<vmem>>, vector<1x128x128xbf16>
      %24 = vector.shape_cast %23 : vector<1x128x128xbf16> to vector<128x128xbf16>
      %cst = arith.constant dense<0.000000e+00> : vector<8x128xf32>
      %25 = tpu.matmul %21, %24, %cst {dimension_numbers = #tpu.dot_dimension_numbers<[1], [0], [0], [1], [0, 0, 1, 1], [], []>} : vector<8x128xbf16>, vector<128x128xbf16>, vector<8x128xf32> -> vector<8x128xf32>
      %26 = arith.addf %22, %25 : vector<8x128xf32>
      %c0_12 = arith.constant 0 : index
      %c0_13 = arith.constant 0 : index
      %27 = vector.load %arg7[%c0_12, %c0_13] : memref<8x128xf32, #tpu.memory_space<vmem>>, vector<8x128xf32>
      tpu.vector_store %arg7[%c0_12, %c0_13], %26 {strides = array<i32>} : memref<8x128xf32, #tpu.memory_space<vmem>>, vector<8x128xf32>,
    } else {
    }
    %c1_i32 = arith.constant 1 : i32
    %14 = arith.subi %1, %c1_i32 : i32
    %15 = arith.cmpi eq, %arg1, %14 : i32
    %16 = arith.extui %15 : i1 to i32
    %c0_i32_5 = arith.constant 0 : i32
    %17 = arith.cmpi ne, %16, %c0_i32_5 : i32
    scf.if %17 {
      %c0 = arith.constant 0 : index
      %c0_6 = arith.constant 0 : index
      %18 = vector.load %arg7[%c0, %c0_6] : memref<8x128xf32, #tpu.memory_space<vmem>>, vector<8x128xf32>
      %c0_7 = arith.constant 0 : index
      %c0_8 = arith.constant 0 : index
      %19 = vector.load %arg8[%c0_7, %c0_8] : memref<8x1xf32, #tpu.memory_space<vmem>>, vector<8x1xf32>
      %20 = arith.sitofp %2 : i32 to f32
      %cst = arith.constant 1.000000e+00 : f32
      %21 = arith.divf %cst, %20 : f32
      %cst_9 = arith.constant dense<0.000000e+00> : vector<128xf32>
      %22 = vector.multi_reduction <add>, %18, %cst_9 [0] : vector<8x128xf32> to vector<128xf32>
      %23 = vector.shape_cast %22 : vector<128xf32> to vector<1x128xf32>
      %24 = vector.broadcast %21 : f32 to vector<1x128xf32>
      %25 = arith.mulf %23, %24 : vector<1x128xf32>
      %26 = vector.broadcast %25 : vector<1x128xf32> to vector<8x128xf32>
      %27 = arith.subf %18, %26 : vector<8x128xf32>
      %28 = vector.broadcast %19 : vector<8x1xf32> to vector<8x128xf32>
      %29 = arith.mulf %27, %28 : vector<8x128xf32>
      %30 = arith.mulf %29, %29 : vector<8x128xf32>
      %cst_10 = arith.constant dense<0.000000e+00> : vector<128xf32>
      %31 = vector.multi_reduction <add>, %30, %cst_10 [0] : vector<8x128xf32> to vector<128xf32>
      %32 = vector.shape_cast %31 : vector<128xf32> to vector<1x128xf32>
      %33 = vector.broadcast %21 : f32 to vector<1x128xf32>
      %34 = arith.mulf %32, %33 : vector<1x128xf32>
      %c0_11 = arith.constant 0 : index
      %c0_12 = arith.constant 0 : index
      %c0_13 = arith.constant 0 : index
      %35 = vector.load %arg5[%c0_11, %c0_12, %c0_13] : memref<1x2x128xf32, #tpu.memory_space<vmem>>, vector<1x2x128xf32>
      %36 = vector.shape_cast %35 : vector<1x2x128xf32> to vector<2x128xf32>
      %37 = vector.extract_strided_slice %36 {offsets = [0, 0], sizes = [1, 128], strides = [1, 1]} : vector<2x128xf32> to vector<1x128xf32>
      %cst_14 = arith.constant 9.99999974E-6 : f32
      %38 = vector.broadcast %cst_14 : f32 to vector<1x128xf32>
      %39 = arith.addf %34, %38 : vector<1x128xf32>
      %40 = math.rsqrt %39 : vector<1x128xf32>
      %41 = arith.mulf %37, %40 : vector<1x128xf32>
      %42 = vector.extract_strided_slice %36 {offsets = [1, 0], sizes = [1, 128], strides = [1, 1]} : vector<2x128xf32> to vector<1x128xf32>
      %43 = arith.mulf %25, %41 : vector<1x128xf32>
      %44 = arith.subf %42, %43 : vector<1x128xf32>
      %45 = vector.broadcast %41 : vector<1x128xf32> to vector<8x128xf32>
      %46 = arith.mulf %18, %45 : vector<8x128xf32>
      %47 = vector.broadcast %44 : vector<1x128xf32> to vector<8x128xf32>
      %48 = arith.addf %46, %47 : vector<8x128xf32>
      %cst_15 = arith.constant 0.000000e+00 : f32
      %49 = vector.broadcast %cst_15 : f32 to vector<8x128xf32>
      %50 = arith.maximumf %48, %49 : vector<8x128xf32>
      %51 = vector.broadcast %19 : vector<8x1xf32> to vector<8x128xf32>
      %52 = arith.mulf %50, %51 : vector<8x128xf32>
      %c0_16 = arith.constant 0 : index
      %c0_17 = arith.constant 0 : index
      %c0_18 = arith.constant 0 : index
      %53 = vector.load %arg6[%c0_16, %c0_17, %c0_18] : memref<1x8x128xf32, #tpu.memory_space<vmem>>, vector<1x8x128xf32>
      %54 = vector.shape_cast %53 : vector<1x8x128xf32> to vector<8x128xf32>
      %55 = vector.shape_cast %52 : vector<8x128xf32> to vector<1x8x128xf32>
      tpu.vector_store %arg6[%c0_16, %c0_17, %c0_18], %55 {strides = array<i32>} : memref<1x8x128xf32, #tpu.memory_space<vmem>>, vector<1x8x128xf32>,
    } else {
    }
    return
  }
  func.func @transform_0(%arg0: i32, %arg1: i32, %arg2: memref<3xi32, #tpu.memory_space<smem>>) -> (i32, i32, i32) {
    %c0_i32 = arith.constant 0 : i32
    %c0_i32_0 = arith.constant 0 : i32
    %c0_i32_1 = arith.constant 0 : i32
    %c0_i32_2 = arith.constant 0 : i32
    return %c0_i32, %c0_i32_0, %c0_i32_1 : i32, i32, i32
  }
  func.func @transform_1(%arg0: i32, %arg1: i32, %arg2: memref<3xi32, #tpu.memory_space<smem>>) -> (i32, i32, i32) {
    %0 = arith.index_cast %arg0 : i32 to index
    %1 = memref.load %arg2[%0] : memref<3xi32, #tpu.memory_space<smem>>
    %c1_i32 = arith.constant 1 : i32
    %2 = arith.subi %1, %c1_i32 : i32
    %3 = arith.minsi %arg1, %2 : i32
    %c0_i32 = arith.constant 0 : i32
    %c0_i32_0 = arith.constant 0 : i32
    return %arg0, %3, %c0_i32 : i32, i32, i32
  }
  func.func @transform_2(%arg0: i32, %arg1: i32, %arg2: memref<3xi32, #tpu.memory_space<smem>>) -> (i32, i32, i32) {
    %c0_i32 = arith.constant 0 : i32
    %c0_i32_0 = arith.constant 0 : i32
    %c0_i32_1 = arith.constant 0 : i32
    return %arg0, %c0_i32, %c0_i32_0 : i32, i32, i32
  }
  func.func @transform_3(%arg0: i32, %arg1: i32, %arg2: memref<3xi32, #tpu.memory_space<smem>>) -> (i32, i32, i32) {
    %c0_i32 = arith.constant 0 : i32
    %c0_i32_0 = arith.constant 0 : i32
    %c0_i32_1 = arith.constant 0 : i32
    %c0_i32_2 = arith.constant 0 : i32
    return %c0_i32, %c0_i32_0, %c0_i32_1 : i32, i32, i32
  }
}

</mosaic_0001>

<llo_original>
// kernel: mlp_pallas.1
$region0: #{mlp_pallas.1}
  #allocation0 [shape = 'u32[]', space=smem, size = 0x4, offset = 0x4, fixed_abs, tag = 'smem constant byte address 0x4 - core index']
  #allocation1 [shape = 'u32[72,128]{1,0:T(1,128)}', space=vmem, size = 0x9000, scoped, tag = 'internal scratch']
  #allocation2 [shape = 'f32[8,128]{1,0:T(8,128)}', space=vmem, size = 0x1000, scoped, tag = 'scratch operand']
  #allocation3 [shape = 'f32[8,1]{1,0:T(8,128)}', space=vmem, size = 0x1000, scoped, tag = 'scratch operand']
  #allocation4 [shape = 's32[1]{0}', space=sflag, size = 0x4, scoped, tag = 'scoped memory for mlp_pallas.1']
  #allocation5 [shape = 'u8[512]{0}', space=smem, size = 0x200, scoped, tag = 'prefetched SMEM operand 0']
  %s0 = inlined_call_operand.vmem [shape: s32[3], index: 0, kind: input, shape index: {}]
  %s1 = inlined_call_operand.vmem [shape: f32[1,8,128], index: 1, kind: input, shape index: {}]
  %s2 = inlined_call_operand.hbm [shape: bf16[2,128,128], index: 2, kind: input, shape index: {}]
  %s3 = inlined_call_operand.vmem [shape: f32[2,2,128], index: 3, kind: input, shape index: {}]
  %s4 = inlined_call_operand.hbm [shape: f32[1,8,128], index: 4, kind: output, shape index: {}]
  %s5 = sld [smem:[#allocation0]]
  $region65: #{mlp_pallas.1} parent=0
    _
  %s7 = ssub.s32 1, %s5
  %s8 = scalar_select 0, %s7, %s5
  %s10 = sshll.u32 %s0, 4
  %s11 = int_to_ptr.vmem [resolvable:$true] %s10
  %13 = dma.vmem_to_smem %s11, 16, [#allocation5], [#allocation4]
  %15 = dma.done [#allocation4], 16
  %16 = sfence
  $region1: #{mlp_pallas.1} parent=0
    #allocation6 [shape = 'u8[65536]{0}', space=vmem, size = 0x10000, scoped, tag = 'input window, operand 2']
    #allocation7 [shape = 's32[2]{0}', space=sflag, size = 0x8, scoped, tag = 'scoped memory for mlp_pallas.1']
    #allocation8 [shape = 's32[2]{0}', space=sflag, size = 0x8, scoped, tag = 'scoped memory for mlp_pallas.1']
    #allocation9 [shape = 'u8[4096]{0}', space=vmem, size = 0x1000, scoped, tag = 'output window, operand 0, single buffered']
    %17 = vsyncpa [#allocation7], 0
    %s18 = scalar_lea.sflag [#allocation7], 1
    %19 = vsyncpa %s18, 0
    %20 = vsyncpa [#allocation8], 0
    loop: start=0, step=1, limit=4
    $region2: #{mlp_pallas.1} parent=1 // loop_pre_header
      _
    $region3: #{mlp_pallas.1} parent=1 // loop_header
      %s22 = sphi 0, %s26
      %p23 = scmp.ge.s32.totalorder %s22, 4
      %s29 = sphi 0, %s41
      %s30 = sphi 0, %s37
      %s31 = sphi 0, %s29
      %s32 = sphi 0, %s30
      %s33 = sphi 0, %s31
      %s34 = sphi 0, %s32
      %s42 = sphi 0, %s42
      %s44 = sphi 0, %s42
      %s45 = sphi 0, %s44
      %s59 = sphi 0, %s45
      %s75 = sphi 0, %s77
      %s78 = sphi 0, %s75
      %s79 = sphi 0, %s78
      %s95 = sphi 0, %s79
      %s101 = sphi 0, %s103
      %s104 = sphi 0, %s101
      %s105 = sphi 0, %s104
      %s121 = sphi 0, %s105
      %s125 = sphi 0, %s125
      %s127 = sphi 0, %s125
      %s128 = sphi 0, %s127
      %s142 = sphi 0, %s128
    $region4: #{mlp_pallas.1} parent=1 // loop_header_branch
      %25 = sbr.rel (%p23) target = $region8
    $region5: #{mlp_pallas.1} parent=1 // loop_body
      %s27 = ssub.s32 %s22, 1
      %s28 = ssub.s32 %s22, 2
      %s35 = sadd.s32 1, %s30
      %p36 = scmp.ge.s32.totalorder %s35, 1
      %s37 = scalar_select %p36, 0, %s35
      %s38 = sadd.s32 1, %s29
      %s39 = scalar_select %p36, %s38, %s29
      %p40 = scmp.ge.s32.totalorder %s39, 2
      %s41 = scalar_select %p40, 0, %s39
      %s43 = sadd.s32 %s42, 1
      %p46 = scmp.eq.s32.totalorder %s22, 1
      %p47 = scmp.ne.s32.totalorder %s42, %s44
      %p48 = scmp.eq.s32.totalorder %s22, 0
      %p49 = por %p47, %p48
      %p50 = scmp.ne.s32.totalorder %s42, %s44
      %p51 = scmp.eq.s32.totalorder %s27, 1
      %p52 = por %p50, %p51
      %p53 = scmp.ne.s32.totalorder %s44, %s45
      %p54 = scmp.eq.s32.totalorder %s27, 0
      %p55 = por %p53, %p54
      %p56 = scmp.ne.s32.totalorder %s44, %s45
      %p57 = scmp.eq.s32.totalorder %s28, 1
      %p58 = por %p56, %p57
      %p60 = scmp.ne.s32.totalorder %s45, %s59
      %p61 = scmp.eq.s32.totalorder %s28, 0
      %p62 = por %p60, %p61
      %s63 = sld [smem:[#allocation5 + %s29]]
      %s64 = ssub.s32 %s63, 1
      %p65 = scmp.lt.s32.totalorder %s30, %s64
      %s66 = scalar_select %p65, %s30, %s64
      %s67 = sld [smem:[#allocation5 + %s41]]
      %s68 = ssub.s32 %s67, 1
      %p69 = scmp.lt.s32.totalorder %s37, %s68
      %s70 = scalar_select %p69, %s37, %s68
      %s71 = ssub.s32 %s29, %s41
      %s72 = ssub.s32 %s66, %s70
      %s73 = sor.u32 %s71, %s72
      %p74 = scmp.eq.s32.totalorder %s73, 0
      %s76 = sadd.s32 %s75, 1
      %s77 = scalar_select %p74, %s75, %s76
      %p80 = pneg %p74
      %p81 = scmp.eq.s32.totalorder %s22, 1
      %p82 = por %p80, %p81
      %p83 = scmp.ne.s32.totalorder %s75, %s78
      %p84 = scmp.eq.s32.totalorder %s22, 0
      %p85 = por %p83, %p84
      %p86 = scmp.ne.s32.totalorder %s75, %s78
      %p87 = scmp.eq.s32.totalorder %s27, 1
      %p88 = por %p86, %p87
      %p89 = scmp.ne.s32.totalorder %s78, %s79
      %p90 = scmp.eq.s32.totalorder %s27, 0
      %p91 = por %p89, %p90
      %p92 = scmp.ne.s32.totalorder %s78, %s79
      %p93 = scmp.eq.s32.totalorder %s28, 1
      %p94 = por %p92, %p93
      %p96 = scmp.ne.s32.totalorder %s79, %s95
      %p97 = scmp.eq.s32.totalorder %s28, 0
      %p98 = por %p96, %p97
      %s99 = ssub.s32 %s29, %s41
      %p100 = scmp.eq.s32.totalorder %s99, 0
      %s102 = sadd.s32 %s101, 1
      %s103 = scalar_select %p100, %s101, %s102
      %p106 = pneg %p100
      %p107 = scmp.eq.s32.totalorder %s22, 1
      %p108 = por %p106, %p107
      %p109 = scmp.ne.s32.totalorder %s101, %s104
      %p110 = scmp.eq.s32.totalorder %s22, 0
      %p111 = por %p109, %p110
      %p112 = scmp.ne.s32.totalorder %s101, %s104
      %p113 = scmp.eq.s32.totalorder %s27, 1
      %p114 = por %p112, %p113
      %p115 = scmp.ne.s32.totalorder %s104, %s105
      %p116 = scmp.eq.s32.totalorder %s27, 0
      %p117 = por %p115, %p116
      %p118 = scmp.ne.s32.totalorder %s104, %s105
      %p119 = scmp.eq.s32.totalorder %s28, 1
      %p120 = por %p118, %p119
      %p122 = scmp.ne.s32.totalorder %s105, %s121
      %p123 = scmp.eq.s32.totalorder %s28, 0
      %p124 = por %p122, %p123
      %s126 = sadd.s32 %s125, 1
      %p129 = scmp.eq.s32.totalorder %s22, 1
      %p130 = scmp.ne.s32.totalorder %s125, %s127
      %p131 = scmp.eq.s32.totalorder %s22, 0
      %p132 = por %p130, %p131
      %p133 = scmp.ne.s32.totalorder %s125, %s127
      %p134 = scmp.eq.s32.totalorder %s27, 1
      %p135 = por %p133, %p134
      %p136 = scmp.ne.s32.totalorder %s127, %s128
      %p137 = scmp.eq.s32.totalorder %s27, 0
      %p138 = por %p136, %p137
      %p139 = scmp.ne.s32.totalorder %s127, %s128
      %p140 = scmp.eq.s32.totalorder %s28, 1
      %p141 = por %p139, %p140
      %p143 = scmp.ne.s32.totalorder %s128, %s142
      %p144 = scmp.eq.s32.totalorder %s28, 0
      %p145 = por %p143, %p144
      %p146 = scmp.le.s32.totalorder 1, %s22
      %p147 = scmp.lt.s32.totalorder %s22, 3
      %p148 = pnand %p146, %p147
      %p149 = pneg %p148
      // Predicated region
      $region9: #{mlp_pallas.1} parent=5 // pred_check
        _
      $region10: #{mlp_pallas.1} parent=5 // pred_check_branch
        %151 = sbr.rel (%p148) target = $region12
      $region11: #{mlp_pallas.1} parent=5 // pred_region
        %s152 = ssub.s32 %s22, 1
        // Predicated region
        $region13: #{mlp_pallas.1} parent=11 // pred_check
          %p153 = pneg %p55
        $region14: #{mlp_pallas.1} parent=11 // pred_check_branch
          %155 = sbr.rel (%p153) target = $region16
        $region15: #{mlp_pallas.1} parent=11 // pred_region
          _
        $region16: #{mlp_pallas.1} parent=11 // pred_fallthru
          _
      $region12: #{mlp_pallas.1} parent=5 // pred_fallthru
        _
      %p156 = scmp.lt.s32.totalorder %s22, 2
      // Predicated region
      $region17: #{mlp_pallas.1} parent=5 // pred_check
        %p157 = pneg %p156
      $region18: #{mlp_pallas.1} parent=5 // pred_check_branch
        %159 = sbr.rel (%p157) target = $region20
      $region19: #{mlp_pallas.1} parent=5 // pred_region
        // Predicated region
        $region21: #{mlp_pallas.1} parent=19 // pred_check
          %p160 = pneg %p85
        $region22: #{mlp_pallas.1} parent=19 // pred_check_branch
          %162 = sbr.rel (%p160) target = $region24
        $region23: #{mlp_pallas.1} parent=19 // pred_region
          %s163 = sand.u32 %s75, 1
          %s164 = scalar_lea.sflag [#allocation7], %s163
          %s165 = sand.u32 %s75, 1
          %s166 = smul.addr %s165, 64
          %s167 = scalar_lea.vmem [#allocation6], %s166
          %s168 = sld [smem:[#allocation5 + %s29]]
          %s169 = ssub.s32 %s168, 1
          %p170 = scmp.lt.s32.totalorder %s30, %s169
          %s171 = scalar_select %p170, %s30, %s169
          %s172 = smul.u32 16, %s171
          %174 = vsyncadd %s164, 0
          %s175 = smul.addr %s29, 16
          %s176 = sadd.s32 %s172, %s175
          %s177 = smul.addr %s176, 4
          %s178 = scalar_lea.hbm %s2, %s177
          %s179 = sshll.u32 %s178, 4
          %s180 = int_to_ptr.hbm [resolvable:$true] %s179
          %s181 = sshll.u32 %s167, 4
          %s182 = int_to_ptr.vmem [resolvable:$true] %s181
          %187 = dma.hbm_to_vmem [thread:$0]  %s180, 1024, %s182, %s164, 64, 64, 4
        $region24: #{mlp_pallas.1} parent=19 // pred_fallthru
          _
        // Predicated region
        $region25: #{mlp_pallas.1} parent=19 // pred_check
          %p188 = pneg %p111
        $region26: #{mlp_pallas.1} parent=19 // pred_check_branch
          %190 = sbr.rel (%p188) target = $region28
        $region27: #{mlp_pallas.1} parent=19 // pred_region
          %p191 = scmp.lt.s32.totalorder %s29, 1
          %s192 = scalar_select %p191, %s29, 1
          %s193 = smul.addr %s192, 2
          %s194 = scalar_lea.vmem %s3, %s193
        $region28: #{mlp_pallas.1} parent=19 // pred_fallthru
          _
      $region20: #{mlp_pallas.1} parent=5 // pred_fallthru
        _
      %p195 = scmp.le.s32.totalorder 1, %s22
      %p196 = scmp.lt.s32.totalorder %s22, 3
      %p197 = pnand %p195, %p196
      %p198 = pneg %p197
      // Predicated region
      $region29: #{mlp_pallas.1} parent=5 // pred_check
        _
      $region30: #{mlp_pallas.1} parent=5 // pred_check_branch
        %200 = sbr.rel (%p197) target = $region32
      $region31: #{mlp_pallas.1} parent=5 // pred_region
        %s201 = ssub.s32 %s22, 1
        %s202 = sand.u32 %s78, 1
        %s203 = scalar_lea.sflag [#allocation7], %s202
        %s204 = sand.u32 %s78, 1
        %s205 = smul.addr %s204, 64
        %s206 = scalar_lea.vmem [#allocation6], %s205
        // Predicated region
        $region33: #{mlp_pallas.1} parent=31 // pred_check
          %p207 = pneg %p91
        $region34: #{mlp_pallas.1} parent=31 // pred_check_branch
          %209 = sbr.rel (%p207) target = $region36
        $region35: #{mlp_pallas.1} parent=31 // pred_region
          %211 = dma.done %s203, 1024
        $region36: #{mlp_pallas.1} parent=31 // pred_fallthru
          _
        %p212 = pneg %p55
        %p213 = pneg %p52
        %s214 = sand.u32 %s78, 1
        %s215 = scalar_lea.sflag [#allocation7], %s214
        %s216 = sand.u32 %s78, 1
        %s217 = smul.addr %s216, 64
        %s218 = scalar_lea.vmem [#allocation6], %s217
        %p219 = pneg %p91
        %p220 = pneg %p88
        %p221 = scmp.lt.s32.totalorder %s31, 1
        %s222 = scalar_select %p221, %s31, 1
        %s223 = smul.addr %s222, 2
        %s224 = scalar_lea.vmem %s3, %s223
        %p225 = pneg %p117
        %p226 = pneg %p114
        %p227 = pneg %p138
        %p228 = pneg %p135
        %s229 = sld [smem:[#allocation5 + %s31]]
        %s230 = ssub.s32 %s229, 1
        %p231 = scmp.lt.s32.totalorder %s32, %s230
        %s232 = scalar_select %p231, %s32, %s230
        %s233 = smul.u32 16, %s232
        %p234 = scmp.lt.s32.totalorder %s31, 1
        %s235 = scalar_select %p234, %s31, 1
        %s236 = smul.addr %s235, 2
        %s237 = scalar_lea.vmem %s3, %s236
        %s238 = sld [smem:[#allocation5 + %s31]]
        %s239 = sld [smem:[#allocation5 + $0x2]]
        %p240 = scmp.eq.s32.totalorder %s31, 0
        %p241 = scmp.eq.s32.totalorder %s32, 0
        %p242 = pnand %p240, %p241
        %p243 = pneg %p242
        // Predicated region
        $region37: #{mlp_pallas.1} parent=31 // pred_check
          _
        $region38: #{mlp_pallas.1} parent=31 // pred_check_branch
          %245 = sbr.rel (%p242) target = $region40
        $region39: #{mlp_pallas.1} parent=31 // pred_region
          %v246 = vld [vmem:[%s1] sm:$0xff]
          %247 = vst [vmem:[#allocation9] sm:$0xff] %v246
          %v248 = vlaneseq
          %v249 = vshrl.u32 %v248, 7
          %v250 = vstv %s239
          %vm251 = vcmp.lt.s32.totalorder %v249, %v250
          %v252 = vsel %vm251, 1, 0
          %v253 = vcvt.s32.f32 %v252
          %vm254 = vcmask 7168
          %255 = vst.msk [vmem:[#allocation3] sm:$0xff] %vm254, %v253
        $region40: #{mlp_pallas.1} parent=31 // pred_fallthru
          _
        // Predicated region
        $region41: #{mlp_pallas.1} parent=31 // pred_check
          %p256 = pneg %p241
        $region42: #{mlp_pallas.1} parent=31 // pred_check_branch
          %258 = sbr.rel (%p256) target = $region44
        $region43: #{mlp_pallas.1} parent=31 // pred_region
          %259 = vst [vmem:[#allocation2] sm:$0xff] 0.0
        $region44: #{mlp_pallas.1} parent=31 // pred_fallthru
          _
        %p260 = scmp.lt.s32.totalorder %s32, %s238
        // Predicated region
        $region45: #{mlp_pallas.1} parent=31 // pred_check
          %p261 = pneg %p260
        $region46: #{mlp_pallas.1} parent=31 // pred_check_branch
          %263 = sbr.rel (%p261) target = $region48
        $region47: #{mlp_pallas.1} parent=31 // pred_region
          %s264 = smul.u32 %s32, 8
          %s265 = scalar_lea.vmem [#allocation9], %s264
          %v266 = vld [vmem:[%s265] sm:$0xff]
          %v267 = vpack.c.bf16 %v266, %v266
          %v268 = vld [vmem:[#allocation2] sm:$0xff]
          %v269 = vld [vmem:[%s206] sm:$0xf]
          %v270 = vld [vmem:[%s206 + $0x4] sm:$0xf]
          %v271 = vld [vmem:[%s206 + $0x8] sm:$0xf]
          %v272 = vld [vmem:[%s206 + $0xc] sm:$0xf]
          %v273 = vld [vmem:[%s206 + $0x10] sm:$0xf]
          %v274 = vld [vmem:[%s206 + $0x14] sm:$0xf]
          %v275 = vld [vmem:[%s206 + $0x18] sm:$0xf]
          %v276 = vld [vmem:[%s206 + $0x1c] sm:$0xf]
          %v277 = vld [vmem:[%s206 + $0x20] sm:$0xf]
          %v278 = vld [vmem:[%s206 + $0x24] sm:$0xf]
          %v279 = vld [vmem:[%s206 + $0x28] sm:$0xf]
          %v280 = vld [vmem:[%s206 + $0x2c] sm:$0xf]
          %v281 = vld [vmem:[%s206 + $0x30] sm:$0xf]
          %v282 = vld [vmem:[%s206 + $0x34] sm:$0xf]
          %v283 = vld [vmem:[%s206 + $0x38] sm:$0xf]
          %v284 = vld [vmem:[%s206 + $0x3c] sm:$0xf]
          %v301 = vunpack.c.l.b16 %v269
          %v302 = vunpack.c.l.b16 %v270
          %v303 = vunpack.c.l.b16 %v271
          %v304 = vunpack.c.l.b16 %v272
          %v305 = vunpack.c.l.b16 %v273
          %v306 = vunpack.c.l.b16 %v274
          %v307 = vunpack.c.l.b16 %v275
          %v308 = vunpack.c.l.b16 %v276
          %v309 = vunpack.c.l.b16 %v277
          %v310 = vunpack.c.l.b16 %v278
          %v311 = vunpack.c.l.b16 %v279
          %v312 = vunpack.c.l.b16 %v280
          %v313 = vunpack.c.l.b16 %v281
          %v314 = vunpack.c.l.b16 %v282
          %v315 = vunpack.c.l.b16 %v283
          %v316 = vunpack.c.l.b16 %v284
          %v317 = vpack.c.b16 %v302, %v301
          %v318 = vpack.c.b16 %v304, %v303
          %v319 = vpack.c.b16 %v306, %v305
          %v320 = vpack.c.b16 %v308, %v307
          %v321 = vpack.c.b16 %v310, %v309
          %v322 = vpack.c.b16 %v312, %v311
          %v323 = vpack.c.b16 %v314, %v313
          %v324 = vpack.c.b16 %v316, %v315
          %333 = vmatpush.bf16.msra.mxu0 %v324
          %334 = vmatpush.bf16.msra.mxu0 %v323
          %335 = vmatpush.bf16.msra.mxu0 %v322
          %336 = vmatpush.bf16.msra.mxu0 %v321
          %337 = vmatpush.bf16.msra.mxu0 %v320
          %338 = vmatpush.bf16.msra.mxu0 %v319
          %339 = vmatpush.bf16.msra.mxu0 %v318
          %340 = vmatpush.bf16.msra.mxu0 %v317
          %341 = vmatmul.bf16.gmra.mxu0 %v267
          %v342 = vpop.f32.mrf.mxu0
          %v343 = vadd.f32 0.0, %v342
          %v344 = vpop.f32.mrf.mxu0
          %345 = vdwg.mxu0
          %v346 = vadd.f32 %v268, %v343
          %347 = vst [vmem:[#allocation2] sm:$0xff] %v346
        $region48: #{mlp_pallas.1} parent=31 // pred_fallthru
          _
        %s348 = ssub.s32 %s238, 1
        %p349 = scmp.eq.s32.totalorder %s32, %s348
        // Predicated region
        $region49: #{mlp_pallas.1} parent=31 // pred_check
          %p350 = pneg %p349
        $region50: #{mlp_pallas.1} parent=31 // pred_check_branch
          %352 = sbr.rel (%p350) target = $region52
        $region51: #{mlp_pallas.1} parent=31 // pred_region
          %v353 = vld [vmem:[#allocation2] sm:$0xff]
          %v354 = vld [vmem:[#allocation3] sm:$0xff]
          %s355 = scvt.s32.f32 %s239
          %v356 = vstv %s355
          %v357 = vrcp.pop %v356
          %v358 = vmul.f32 %v356, %v357
          %v359 = vsub.f32 1.0, %v358
          %v360 = vmul.f32 %v357, %v359
          %v361 = vadd.f32 %v357, %v360
          %vm362 = vweird.f32 %v356
          %vm363 = vweird.f32 %v357
          %vm364 = vmor %vm362, %vm363
          %v365 = vsel %vm364, %v357, %v361
          %v366 = vand.u32 2147483647, %v356
          %vm367 = vcmp.eq.f32.partialorder %v366, 8.507059e+37
          %v368 = vand.u32 %v356, 2147483648
          %v369 = vor.u32 1.1754944e-38, %v368
          %v370 = vsel %vm367, %v369, %v365
          %s371 = vtos %v370
          %v372 = vrot.slane %v353, 4
          %v373 = vadd.f32 %v353, %v372
          %v374 = vrot.slane %v373, 2
          %v375 = vadd.f32 %v373, %v374
          %v376 = vrot.slane %v375, 1
          %v377 = vadd.f32 %v375, %v376
          %v378 = vstv %s371
          %v379 = vmul.f32 %v377, %v378
          %v380 = vsub.f32 %v353, %v379
          %382 = vset.pattern.permute.xlu0 0
          %383 = vperm.xlu0 %382, %v354
          %v384 = vpop.permute.xlu0 %383
          %v386 = vmul.f32 %v380, %v384
          %v387 = vmul.f32 %v386, %v386
          %v388 = vrot.slane %v387, 4
          %v389 = vadd.f32 %v387, %v388
          %v390 = vrot.slane %v389, 2
          %v391 = vadd.f32 %v389, %v390
          %v392 = vrot.slane %v391, 1
          %v393 = vadd.f32 %v391, %v392
          %v394 = vmul.f32 %v393, %v378
          %v395 = vld [vmem:[%s237] sm:$0x3]
          %v396 = vadd.f32 %v394, 1e-05
          %v397 = vrsqrt.pop %v396
          %v398 = vmul.f32 %v397, %v396
          %v399 = vmul.f32 %v398, %v397
          %v400 = vmul.f32 0.5, %v399
          %v401 = vsub.f32 1.5, %v400
          %v402 = vmul.f32 %v397, %v401
          %vm403 = vweird.f32 %v396
          %vm404 = vweird.f32 %v397
          %vm405 = vmor %vm403, %vm404
          %v406 = vsel %vm405, %v397, %v402
          %v407 = vmul.f32 %v395, %v406
          %v408 = vmul.f32 %v379, %v407
          %v410 = vrot.slane %v408, 7
          %v412 = vsub.f32 %v395, %v410
          %v413 = vperm.slane %v407, 0
          %v414 = vmul.f32 %v353, %v413
          %v415 = vperm.slane %v412, 1
          %v416 = vadd.f32 %v414, %v415
          %v417 = vmax.f32 %v416, 0.0
          %v418 = vmul.f32 %v417, %v384
          %419 = vst [vmem:[#allocation9] sm:$0xff] %v418
        $region52: #{mlp_pallas.1} parent=31 // pred_fallthru
          _
        // Predicated region
        $region53: #{mlp_pallas.1} parent=31 // pred_check
          %p420 = pneg %p135
        $region54: #{mlp_pallas.1} parent=31 // pred_check_branch
          %422 = sbr.rel (%p420) target = $region56
        $region55: #{mlp_pallas.1} parent=31 // pred_region
          %424 = vsyncadd [#allocation8], 0
          %s426 = sshll.u32 [#allocation9], 4
          %s427 = int_to_ptr.vmem [resolvable:$true] %s426
          %s428 = sshll.u32 %s4, 4
          %s429 = int_to_ptr.hbm [resolvable:$true] %s428
          %431 = dma.vmem_to_hbm [thread:$0]  %s427, 128, %s429, [#allocation8]
        $region56: #{mlp_pallas.1} parent=31 // pred_fallthru
          _
        // Predicated region
        $region57: #{mlp_pallas.1} parent=31 // pred_check
          %p432 = pneg %p135
        $region58: #{mlp_pallas.1} parent=31 // pred_check_branch
          %434 = sbr.rel (%p432) target = $region60
        $region59: #{mlp_pallas.1} parent=31 // pred_region
          %436 = dma.done [#allocation8], 128
        $region60: #{mlp_pallas.1} parent=31 // pred_fallthru
          _
      $region32: #{mlp_pallas.1} parent=5 // pred_fallthru
        _
      %p437 = scmp.le.s32.totalorder 2, %s22
      // Predicated region
      $region61: #{mlp_pallas.1} parent=5 // pred_check
        %p438 = pneg %p437
      $region62: #{mlp_pallas.1} parent=5 // pred_check_branch
        %440 = sbr.rel (%p438) target = $region64
      $region63: #{mlp_pallas.1} parent=5 // pred_region
        %s441 = ssub.s32 %s22, 2
      $region64: #{mlp_pallas.1} parent=5 // pred_fallthru
        _
    $region6: #{mlp_pallas.1} parent=1 // loop_footer
      %s26 = sadd.s32 1, %s22
    $region7: #{mlp_pallas.1} parent=1 // loop_footer_branch
      %21 = sbr.rel target = $region3
    $region8: #{mlp_pallas.1} parent=1 // loop_exit
      _
    %442 = vsyncpa [#allocation7], 1
    %s443 = scalar_lea.sflag [#allocation7], 1
    %444 = vsyncpa %s443, 1
    %445 = vsyncpa [#allocation8], 1
    %s446 = scalar_lea.sflag [#allocation8], 1
    %447 = vsyncpa %s446, 1

</llo_original>
